<compile_context>
chip_gen: v7x
topology: tpu7x:2x2x1
jax: 0.10.0
libtpu: 0.0.40
codegen_flags: <defaults>
</compile_context>

<pallas_src>
import functools

import jax
import jax.numpy as jnp
from jax.experimental import pallas as pl
from jax.experimental.pallas import tpu as pltpu


# ----------------------------- kernels ---------------------------------------


def _layer_norm_kernel(x_ref, w_ref, o_ref, *, eps):
    """General path: one logical row per sublane row, full D on the lane axis."""
    x = x_ref[...].astype(jnp.float32)                     # (tm, D) f32 upcast
    d = x.shape[-1]
    mean = jnp.sum(x, axis=-1, keepdims=True) * (1.0 / d)
    xc = x - mean                                          # x dead after this line
    var = jnp.sum(xc * xc, axis=-1, keepdims=True) * (1.0 / d)
    inv = jax.lax.rsqrt(var + eps)                         # EUP slot, ~free
    w = w_ref[...].astype(jnp.float32)                     # (1, D)
    o_ref[...] = (w * (xc * inv)).astype(o_ref.dtype)      # single fused store expr


def _layer_norm_packed_kernel(x_ref, w_ref, seg_ref, o_ref, *, eps, d):
    """Packed path for D < 128: `pack = 128 // D` logical rows per lane-dense row.

    seg is a (128, 128) block-diagonal ones matrix (seg[i, j] = 1 iff i//D == j//D),
    so `x @ seg` broadcasts each D-lane group's sum back to every lane of the group.
    HIGHEST precision keeps the f32 reduction exact enough to match torch numerics.
    """
    x = x_ref[...].astype(jnp.float32)                     # (tm, 128)
    seg = seg_ref[...]                                     # (128, 128) f32
    inv_d = 1.0 / d
    mean = jnp.dot(x, seg, preferred_element_type=jnp.float32,
                   precision=jax.lax.Precision.HIGHEST) * inv_d
    xc = x - mean
    var = jnp.dot(xc * xc, seg, preferred_element_type=jnp.float32,
                  precision=jax.lax.Precision.HIGHEST) * inv_d
    inv = jax.lax.rsqrt(var + eps)
    w = w_ref[...].astype(jnp.float32)                     # (1, 128) = weight tiled
    o_ref[...] = (w * (xc * inv)).astype(o_ref.dtype)


# ----------------------------- wrapper helpers --------------------------------


def _sublane_multiple(dtype) -> int:
    return {4: 8, 2: 16, 1: 32}.get(jnp.dtype(dtype).itemsize, 8)


def _round_up(x: int, m: int) -> int:
    return ((x + m - 1) // m) * m


def _cdiv(a: int, b: int) -> int:
    return (a + b - 1) // b


def _vmem_capacity_bytes() -> int:
    try:
        info = pltpu.get_tpu_info()
        cap = int(getattr(info, "vmem_capacity_bytes", 0))
        if cap > 0:
            return cap
    except Exception:
        pass
    # Per-generation fallback: v4/v5e/v6e have 128 MiB VMEM; v7x has 64 MiB per TC.
    try:
        kind = jax.devices()[0].device_kind.lower()
        if ("v4" in kind) or ("v5" in kind) or ("v6" in kind):
            return 128 * 1024 * 1024
    except Exception:
        pass
    return 64 * 1024 * 1024


# ----------------------------- public wrapper ---------------------------------


def korkut_layer_norm(x, weight, eps=1e-5):
    """LayerNorm over the last axis with weight and no bias (koRKutLayerNorm forward)."""
    orig_shape = x.shape
    d = int(orig_shape[-1])

    # torch: non-float inputs are cast to float32 before normalizing; the final
    # `weight * normalized_x` follows torch type promotion (bf16 x, f32 w -> f32 out).
    compute_dtype = x.dtype if jnp.issubdtype(x.dtype, jnp.floating) else jnp.float32
    out_dtype = jnp.promote_types(compute_dtype, weight.dtype)

    rows = 1
    for s in orig_shape[:-1]:
        rows *= int(s)
    if rows == 0 or d == 0:
        return jnp.zeros(orig_shape, out_dtype)

    x2 = x.reshape(rows, d)                                # contiguous -> free reshape

    # ---- lane-dense repack for small D ---------------------------------------
    packed = (0 < d < 128) and (128 % d == 0) and (rows % (128 // d) == 0)
    if packed:
        pack = 128 // d
        d_v, rows_v = 128, rows // pack
        x2 = x2.reshape(rows_v, d_v)                       # still a contiguous view
        w2 = jnp.tile(weight.reshape(-1), pack).reshape(1, d_v)
        lane = jnp.arange(d_v, dtype=jnp.int32)
        seg = (lane[:, None] // d == lane[None, :] // d).astype(jnp.float32)
    else:
        d_v, rows_v = d, rows
        w2 = weight.reshape(1, d_v)
        seg = None
    # TODO(synk): D < 128 with 128 % D != 0 (or ragged row counts) still takes the
    # masked-store path; a padded repack would fix it at the cost of an extra copy.

    in_bytes = jnp.dtype(x2.dtype).itemsize
    out_bytes = jnp.dtype(out_dtype).itemsize
    w_bytes = jnp.dtype(weight.dtype).itemsize
    sublane = max(_sublane_multiple(x2.dtype), _sublane_multiple(out_dtype))

    # ---- tile-size selection: biggest row tile whose FULL working set fits ----
    vmem = _vmem_capacity_bytes()
    budget = int(vmem * 0.5)
    # double-buffered input + output tiles PLUS the in-kernel f32 temporaries
    # (x upcast / xc) that Mosaic materializes in VMEM for large tiles.
    per_row = 2 * d_v * (in_bytes + out_bytes) + 3 * d_v * 4
    tm = max(sublane, budget // max(per_row, 1))
    tm = min(tm, 1024)                                     # diminishing returns past ~1k
    tm = min(tm, _round_up(rows_v, sublane))
    tm = max(sublane, (tm // sublane) * sublane)

    # v7x megacore: guarantee >= 2 grid steps so the "parallel" axis shards across
    # both TensorCores (an extra step costs ~0.35 us -> noise on v5e/v6e).
    if rows_v > sublane and _cdiv(rows_v, tm) < 2:
        tm = max(sublane, _round_up(_cdiv(rows_v, 2), sublane))

    num_steps = _cdiv(rows_v, tm)
    grid = (num_steps,)

    # Deeper input buffering only when per-step tiles are tiny (fixed per-step
    # overhead otherwise exposed, esp. on v7x's 3.2 TB/s HBM).
    x_tile_bytes = tm * d_v * in_bytes
    deep = (x_tile_bytes < (256 << 10)) and (num_steps >= 4)
    x_buffers = 3 if deep else 2
    if deep:
        x_spec = pl.BlockSpec((tm, d_v), lambda i: (i, 0), pipeline_mode=pl.Buffered(3))
    else:
        x_spec = pl.BlockSpec((tm, d_v), lambda i: (i, 0))

    seg_bytes = (d_v * d_v * 4) if packed else 0
    working_set = (tm * d_v * (x_buffers * in_bytes + 2 * out_bytes + 3 * 4)
                   + d_v * (w_bytes + 4) + seg_bytes)
    vmem_limit = min(int(vmem * 0.9), max(working_set + (16 << 20), 32 << 20))

    matmul_flops = (2 * 2 * rows_v * d_v * d_v) if packed else 0
    cost = pl.CostEstimate(
        flops=int(7 * rows * d + matmul_flops),
        transcendentals=int(rows),
        bytes_accessed=int(rows * d * (in_bytes + out_bytes) + d * w_bytes + seg_bytes),
    )

    in_specs = [x_spec, pl.BlockSpec((1, d_v), lambda i: (0, 0))]
    inputs = [x2, w2]
    if packed:
        in_specs.append(pl.BlockSpec((d_v, d_v), lambda i: (0, 0)))
        inputs.append(seg)
        kernel = functools.partial(_layer_norm_packed_kernel, eps=float(eps), d=d)
    else:
        kernel = functools.partial(_layer_norm_kernel, eps=float(eps))

    # Ragged last block: out-of-range rows may compute inf/NaN from padded garbage,
    # but Pallas masks them on store, so the result is unaffected.
    out = pl.pallas_call(
        kernel,
        out_shape=jax.ShapeDtypeStruct((rows_v, d_v), out_dtype),
        grid_spec=pltpu.PrefetchScalarGridSpec(
            num_scalar_prefetch=0,
            grid=grid,
            in_specs=in_specs,
            out_specs=pl.BlockSpec((tm, d_v), lambda i: (i, 0)),
        ),
        compiler_params=pltpu.CompilerParams(
            dimension_semantics=("parallel",),             # rows shard across TCs on v7x
            vmem_limit_bytes=int(vmem_limit),
        ),
        cost_estimate=cost,
    )(*inputs)

    return out.reshape(orig_shape)


# ----------------------------- demo / sanity check ----------------------------


if __name__ == "__main__":
    key = jax.random.PRNGKey(0)

    # 1) Module-default shapes (hidden=32 exercises the lane-dense packed path).
    batch, seq, hidden = 2, 8, 32
    x = jax.random.normal(key, (batch, seq, hidden), dtype=jnp.float32)
    weight = jnp.ones((hidden,), dtype=jnp.float32)        # module init: ones(embedding_dim)

    out = korkut_layer_norm(x, weight, eps=1e-5)
    out = jax.block_until_ready(out)

    mean = jnp.mean(x, axis=-1, keepdims=True)
    var = jnp.mean((x - mean) ** 2, axis=-1, keepdims=True)  # unbiased=False
    ref = weight * (x - mean) / jnp.sqrt(var + 1e-5)
    assert out.dtype == x.dtype, "output dtype should follow torch promotion"
    assert jnp.allclose(out, ref, atol=1e-5, rtol=1e-5), "packed-path mismatch vs reference"

    # 2) General path + dtype promotion check (bf16 x, f32 weight -> f32 out).
    hidden2 = 256
    xb = jax.random.normal(jax.random.PRNGKey(1), (batch, seq, hidden2), dtype=jnp.bfloat16)
    wb = jnp.ones((hidden2,), dtype=jnp.float32)
    out2 = jax.block_until_ready(korkut_layer_norm(xb, wb, eps=1e-5))

    xf = xb.astype(jnp.float32)
    m2 = jnp.mean(xf, axis=-1, keepdims=True)
    v2 = jnp.mean((xf - m2) ** 2, axis=-1, keepdims=True)
    ref2 = wb * (xf - m2) / jnp.sqrt(v2 + 1e-5)
    assert out2.dtype == jnp.float32, "bf16 x * f32 weight should promote to f32"
    assert jnp.allclose(out2, ref2, atol=1e-4, rtol=1e-4), "general-path mismatch vs reference"

    print("KERNEL_OK")
</pallas_src>

<mosaic_0001>
module attributes {stable_mosaic.version = 11 : i64} {
  func.func @_layer_norm_packed_kernel(%arg0: i32, %arg1: memref<8x128xf32, #tpu.memory_space<vmem>>, %arg2: memref<1x128xf32, #tpu.memory_space<vmem>>, %arg3: memref<128x128xf32, #tpu.memory_space<vmem>>, %arg4: memref<8x128xf32, #tpu.memory_space<vmem>>) attributes {dimension_semantics = [#tpu.dimension_semantics<parallel>], iteration_bounds = array<i64: 1>, scalar_prefetch = 0 : i64, scratch_operands = 0 : i64, tpu.core_type = #tpu.core_type<tc>, window_params = [{transform_indices = @transform_0, window_bounds = array<i64: 8, 128>}, {pipeline_mode = #tpu.pipeline_mode<synchronous>, transform_indices = @transform_1, window_bounds = array<i64: 1, 128>}, {pipeline_mode = #tpu.pipeline_mode<synchronous>, transform_indices = @transform_2, window_bounds = array<i64: 128, 128>}, {transform_indices = @transform_3, window_bounds = array<i64: 8, 128>}]} {
    %c0 = arith.constant 0 : index
    %c0_0 = arith.constant 0 : index
    %0 = vector.load %arg1[%c0, %c0_0] : memref<8x128xf32, #tpu.memory_space<vmem>>, vector<8x128xf32>
    %c0_1 = arith.constant 0 : index
    %c0_2 = arith.constant 0 : index
    %1 = vector.load %arg3[%c0_1, %c0_2] : memref<128x128xf32, #tpu.memory_space<vmem>>, vector<128x128xf32>
    %cst = arith.constant dense<0.000000e+00> : vector<8x128xf32>
    %2 = tpu.matmul %0, %1, %cst {dimension_numbers = #tpu.dot_dimension_numbers<[1], [0], [0], [1], [0, 0, 1, 1], [], []>, precision = #tpu.contract_precision<fp32>} : vector<8x128xf32>, vector<128x128xf32>, vector<8x128xf32> -> vector<8x128xf32>
    %cst_3 = arith.constant 3.125000e-02 : f32
    %3 = vector.broadcast %cst_3 : f32 to vector<8x128xf32>
    %4 = arith.mulf %2, %3 : vector<8x128xf32>
    %5 = arith.subf %0, %4 : vector<8x128xf32>
    %6 = arith.mulf %5, %5 : vector<8x128xf32>
    %cst_4 = arith.constant dense<0.000000e+00> : vector<8x128xf32>
    %7 = tpu.matmul %6, %1, %cst_4 {dimension_numbers = #tpu.dot_dimension_numbers<[1], [0], [0], [1], [0, 0, 1, 1], [], []>, precision = #tpu.contract_precision<fp32>} : vector<8x128xf32>, vector<128x128xf32>, vector<8x128xf32> -> vector<8x128xf32>
    %cst_5 = arith.constant 3.125000e-02 : f32
    %8 = vector.broadcast %cst_5 : f32 to vector<8x128xf32>
    %9 = arith.mulf %7, %8 : vector<8x128xf32>
    %cst_6 = arith.constant 9.99999974E-6 : f32
    %10 = vector.broadcast %cst_6 : f32 to vector<8x128xf32>
    %11 = arith.addf %9, %10 : vector<8x128xf32>
    %12 = math.rsqrt %11 : vector<8x128xf32>
    %c0_7 = arith.constant 0 : index
    %c0_8 = arith.constant 0 : index
    %13 = vector.load %arg2[%c0_7, %c0_8] : memref<1x128xf32, #tpu.memory_space<vmem>>, vector<1x128xf32>
    %14 = arith.mulf %5, %12 : vector<8x128xf32>
    %15 = vector.broadcast %13 : vector<1x128xf32> to vector<8x128xf32>
    %16 = arith.mulf %15, %14 : vector<8x128xf32>
    %c0_9 = arith.constant 0 : index
    %c0_10 = arith.constant 0 : index
    %17 = vector.load %arg4[%c0_9, %c0_10] : memref<8x128xf32, #tpu.memory_space<vmem>>, vector<8x128xf32>
    tpu.vector_store %arg4[%c0_9, %c0_10], %16 {strides = array<i32>} : memref<8x128xf32, #tpu.memory_space<vmem>>, vector<8x128xf32>,
    return
  }
  func.func @transform_0(%arg0: i32) -> (i32, i32) {
    %c0_i32 = arith.constant 0 : i32
    %c0_i32_0 = arith.constant 0 : i32
    return %arg0, %c0_i32 : i32, i32
  }
  func.func @transform_1(%arg0: i32) -> (i32, i32) {
    %c0_i32 = arith.constant 0 : i32
    %c0_i32_0 = arith.constant 0 : i32
    %c0_i32_1 = arith.constant 0 : i32
    return %c0_i32, %c0_i32_0 : i32, i32
  }
  func.func @transform_2(%arg0: i32) -> (i32, i32) {
    %c0_i32 = arith.constant 0 : i32
    %c0_i32_0 = arith.constant 0 : i32
    %c0_i32_1 = arith.constant 0 : i32
    return %c0_i32, %c0_i32_0 : i32, i32
  }
  func.func @transform_3(%arg0: i32) -> (i32, i32) {
    %c0_i32 = arith.constant 0 : i32
    %c0_i32_0 = arith.constant 0 : i32
    return %arg0, %c0_i32 : i32, i32
  }
}

</mosaic_0001>

<llo_original>
// kernel: tpu_custom_call.1
$region0: #{tpu_custom_call.1}
  #allocation0 [shape = 'u32[]', space=smem, size = 0x4, offset = 0x4, fixed_abs, tag = 'smem constant byte address 0x4 - core index']
  #allocation1 [shape = 'u32[144,128]{1,0:T(1,128)}', space=vmem, size = 0x12000, scoped, tag = 'internal scratch']
  %s0 = inlined_call_operand.hbm [shape: f32[4,128], index: 0, kind: input, shape index: {}]
  %s1 = inlined_call_operand.vmem [shape: f32[1,128], index: 1, kind: input, shape index: {}]
  %s2 = inlined_call_operand.hbm [shape: f32[128,128], index: 2, kind: input, shape index: {}]
  %s3 = inlined_call_operand.hbm [shape: f32[4,128], index: 3, kind: output, shape index: {}]
  %s4 = sld [smem:[#allocation0]]
  $region30: #{tpu_custom_call.1} parent=0
    _
  %s6 = ssub.s32 1, %s4
  %s7 = scalar_select 0, %s6, %s4
  $region1: #{tpu_custom_call.1} parent=0
    #allocation2 [shape = 'u8[4096]{0}', space=vmem, size = 0x1000, scoped, tag = 'input window, operand 0, single buffered']
    #allocation3 [shape = 's32[1]{0}', space=sflag, size = 0x4, scoped, tag = 'scoped memory for tpu_custom_call.1']
    #allocation4 [shape = 's32[1]{0}', space=sflag, size = 0x4, scoped, tag = 'scoped memory for tpu_custom_call.1']
    #allocation5 [shape = 'u8[65536]{0}', space=vmem, size = 0x10000, scoped, tag = 'input window, operand 2, single buffered']
    #allocation6 [shape = 's32[1]{0}', space=sflag, size = 0x4, scoped, tag = 'scoped memory for tpu_custom_call.1']
    #allocation7 [shape = 'u8[4096]{0}', space=vmem, size = 0x1000, scoped, tag = 'output window, operand 0, single buffered']
    %8 = vsyncpa [#allocation3], 0
    %9 = vsyncpa [#allocation6], 0
    %10 = vsyncpa [#allocation4], 0
    // Predicated region
    $region2: #{tpu_custom_call.1} parent=1 // pred_check
      _
    $region3: #{tpu_custom_call.1} parent=1 // pred_check_branch
      %12 = sbr.rel (0) target = $region5
    $region4: #{tpu_custom_call.1} parent=1 // pred_region
      %s14 = ssub.s32 128, 64
      %15 = vsyncadd [#allocation3], %s14
      %s16 = sshll.u32 [#allocation2], 4
      %s17 = int_to_ptr.vmem [resolvable:$true] %s16
      %22 = dma.hbm_to_vmem [thread:$0]  %s0, 64, %s17, [#allocation3], 64, 64, 4
    $region5: #{tpu_custom_call.1} parent=1 // pred_fallthru
      _
    // Predicated region
    $region6: #{tpu_custom_call.1} parent=1 // pred_check
      _
    $region7: #{tpu_custom_call.1} parent=1 // pred_check_branch
      %24 = sbr.rel (0) target = $region9
    $region8: #{tpu_custom_call.1} parent=1 // pred_region
      _
    $region9: #{tpu_custom_call.1} parent=1 // pred_fallthru
      _
    // Predicated region
    $region10: #{tpu_custom_call.1} parent=1 // pred_check
      _
    $region11: #{tpu_custom_call.1} parent=1 // pred_check_branch
      %26 = sbr.rel (0) target = $region13
    $region12: #{tpu_custom_call.1} parent=1 // pred_region
      %s28 = ssub.s32 2048, 2048
      %29 = vsyncadd [#allocation6], %s28
      %s30 = sshll.u32 [#allocation5], 4
      %s31 = int_to_ptr.vmem [resolvable:$true] %s30
      %36 = dma.hbm_to_vmem [thread:$0]  %s2, 2048, %s31, [#allocation6], 128, 128, 8
    $region13: #{tpu_custom_call.1} parent=1 // pred_fallthru
      _
    // Predicated region
    $region14: #{tpu_custom_call.1} parent=1 // pred_check
      _
    $region15: #{tpu_custom_call.1} parent=1 // pred_check_branch
      %38 = sbr.rel (0) target = $region17
    $region16: #{tpu_custom_call.1} parent=1 // pred_region
      %39 = dma.done [#allocation3], 128
    $region17: #{tpu_custom_call.1} parent=1 // pred_fallthru
      _
    // Predicated region
    $region18: #{tpu_custom_call.1} parent=1 // pred_check
      _
    $region19: #{tpu_custom_call.1} parent=1 // pred_check_branch
      %41 = sbr.rel (0) target = $region21
    $region20: #{tpu_custom_call.1} parent=1 // pred_region
      %42 = dma.done [#allocation6], 2048
    $region21: #{tpu_custom_call.1} parent=1 // pred_fallthru
      _
    %v43 = vld [vmem:[#allocation2] sm:$0xff]
    %v44 = vld [vmem:[#allocation5] sm:$0xff]
    %v45 = vld [vmem:[#allocation5 + $0x8] sm:$0xff]
    %v46 = vld [vmem:[#allocation5 + $0x10] sm:$0xff]
    %v47 = vld [vmem:[#allocation5 + $0x18] sm:$0xff]
    %v48 = vld [vmem:[#allocation5 + $0x20] sm:$0xff]
    %v49 = vld [vmem:[#allocation5 + $0x28] sm:$0xff]
    %v50 = vld [vmem:[#allocation5 + $0x30] sm:$0xff]
    %v51 = vld [vmem:[#allocation5 + $0x38] sm:$0xff]
    %v52 = vld [vmem:[#allocation5 + $0x40] sm:$0xff]
    %v53 = vld [vmem:[#allocation5 + $0x48] sm:$0xff]
    %v54 = vld [vmem:[#allocation5 + $0x50] sm:$0xff]
    %v55 = vld [vmem:[#allocation5 + $0x58] sm:$0xff]
    %v56 = vld [vmem:[#allocation5 + $0x60] sm:$0xff]
    %v57 = vld [vmem:[#allocation5 + $0x68] sm:$0xff]
    %v58 = vld [vmem:[#allocation5 + $0x70] sm:$0xff]
    %v59 = vld [vmem:[#allocation5 + $0x78] sm:$0xff]
    %60 = vmatprep.subr.mxu0 0.0
    %v61 = vand.u32 %v44, 4294901760
    %62 = vmatpush1.msra.mxu0 %v61
    %63 = vmatprep.subr.mxu0 0.0
    %v64 = vand.u32 %v45, 4294901760
    %65 = vmatpush1.msra.mxu0 %v64
    %66 = vmatprep.subr.mxu0 0.0
    %v67 = vand.u32 %v46, 4294901760
    %68 = vmatpush1.msra.mxu0 %v67
    %69 = vmatprep.subr.mxu0 0.0
    %v70 = vand.u32 %v47, 4294901760
    %71 = vmatpush1.msra.mxu0 %v70
    %72 = vmatprep.subr.mxu0 0.0
    %v73 = vand.u32 %v48, 4294901760
    %74 = vmatpush1.msra.mxu0 %v73
    %75 = vmatprep.subr.mxu0 0.0
    %v76 = vand.u32 %v49, 4294901760
    %77 = vmatpush1.msra.mxu0 %v76
    %78 = vmatprep.subr.mxu0 0.0
    %v79 = vand.u32 %v50, 4294901760
    %80 = vmatpush1.msra.mxu0 %v79
    %81 = vmatprep.subr.mxu0 0.0
    %v82 = vand.u32 %v51, 4294901760
    %83 = vmatpush1.msra.mxu0 %v82
    %84 = vmatprep.subr.mxu0 0.0
    %v85 = vand.u32 %v52, 4294901760
    %86 = vmatpush1.msra.mxu0 %v85
    %87 = vmatprep.subr.mxu0 0.0
    %v88 = vand.u32 %v53, 4294901760
    %89 = vmatpush1.msra.mxu0 %v88
    %90 = vmatprep.subr.mxu0 0.0
    %v91 = vand.u32 %v54, 4294901760
    %92 = vmatpush1.msra.mxu0 %v91
    %93 = vmatprep.subr.mxu0 0.0
    %v94 = vand.u32 %v55, 4294901760
    %95 = vmatpush1.msra.mxu0 %v94
    %96 = vmatprep.subr.mxu0 0.0
    %v97 = vand.u32 %v56, 4294901760
    %98 = vmatpush1.msra.mxu0 %v97
    %99 = vmatprep.subr.mxu0 0.0
    %v100 = vand.u32 %v57, 4294901760
    %101 = vmatpush1.msra.mxu0 %v100
    %102 = vmatprep.subr.mxu0 0.0
    %v103 = vand.u32 %v58, 4294901760
    %104 = vmatpush1.msra.mxu0 %v103
    %105 = vmatprep.subr.mxu0 0.0
    %v106 = vand.u32 %v59, 4294901760
    %107 = vmatpush1.msra.mxu0 %v106
    %108 = vmatprep.subr.mxu0 0.0
    %109 = vmatpush1.msra.mxu0 0.0
    %110 = vmatprep.subr.mxu0 0.0
    %111 = vmatpush1.msra.mxu0 0.0
    %112 = vmatprep.subr.mxu0 0.0
    %113 = vmatpush1.msra.mxu0 0.0
    %114 = vmatprep.subr.mxu0 0.0
    %115 = vmatpush1.msra.mxu0 0.0
    %116 = vmatprep.subr.mxu0 0.0
    %117 = vmatpush1.msra.mxu0 0.0
    %118 = vmatprep.subr.mxu0 0.0
    %119 = vmatpush1.msra.mxu0 0.0
    %120 = vmatprep.subr.mxu0 0.0
    %121 = vmatpush1.msra.mxu0 0.0
    %122 = vmatprep.subr.mxu0 0.0
    %123 = vmatpush1.msra.mxu0 0.0
    %124 = vmatprep.subr.mxu0 0.0
    %125 = vmatpush1.msra.mxu0 0.0
    %126 = vmatprep.subr.mxu0 0.0
    %127 = vmatpush1.msra.mxu0 0.0
    %128 = vmatprep.subr.mxu0 0.0
    %129 = vmatpush1.msra.mxu0 0.0
    %130 = vmatprep.subr.mxu0 0.0
    %131 = vmatpush1.msra.mxu0 0.0
    %132 = vmatprep.subr.mxu0 0.0
    %133 = vmatpush1.msra.mxu0 0.0
    %134 = vmatprep.subr.mxu0 0.0
    %135 = vmatpush1.msra.mxu0 0.0
    %136 = vmatprep.subr.mxu0 0.0
    %137 = vmatpush1.msra.mxu0 0.0
    %138 = vmatprep.subr.mxu0 0.0
    %139 = vmatpush1.msra.mxu0 0.0
    %140 = vmatprep.mubr.f32.mxu0 0.0
    %v141 = vand.u32 %v43, 4294901760
    %v142 = vsub.f32 %v43, %v141
    %v143 = vand.u32 %v142, 4294901760
    %v144 = vsub.f32 %v142, %v143
    %v145 = vand.u32 %v144, 4294901760
    %146 = vmatmul.mubr.f32.gmra.mrb[0].mxu0 %v145
    %v147 = vpop.f32.mrb[0].mxu0
    %v148 = vadd.f32 0.0, %v147
    %v149 = vpop.f32.mrb[0].mxu0
    %150 = vdwg.mxu0
    %151 = vmatprep.subr.mxu0 0.0
    %v152 = vand.u32 %v44, 4294901760
    %v153 = vsub.f32 %v44, %v152
    %v154 = vand.u32 %v153, 4294901760
    %v155 = vsub.f32 %v153, %v154
    %v156 = vand.u32 %v155, 4294901760
    %157 = vmatpush1.msra.mxu0 %v156
    %158 = vmatprep.subr.mxu0 0.0
    %v159 = vand.u32 %v45, 4294901760
    %v160 = vsub.f32 %v45, %v159
    %v161 = vand.u32 %v160, 4294901760
    %v162 = vsub.f32 %v160, %v161
    %v163 = vand.u32 %v162, 4294901760
    %164 = vmatpush1.msra.mxu0 %v163
    %165 = vmatprep.subr.mxu0 0.0
    %v166 = vand.u32 %v46, 4294901760
    %v167 = vsub.f32 %v46, %v166
    %v168 = vand.u32 %v167, 4294901760
    %v169 = vsub.f32 %v167, %v168
    %v170 = vand.u32 %v169, 4294901760
    %171 = vmatpush1.msra.mxu0 %v170
    %172 = vmatprep.subr.mxu0 0.0
    %v173 = vand.u32 %v47, 4294901760
    %v174 = vsub.f32 %v47, %v173
    %v175 = vand.u32 %v174, 4294901760
    %v176 = vsub.f32 %v174, %v175
    %v177 = vand.u32 %v176, 4294901760
    %178 = vmatpush1.msra.mxu0 %v177
    %179 = vmatprep.subr.mxu0 0.0
    %v180 = vand.u32 %v48, 4294901760
    %v181 = vsub.f32 %v48, %v180
    %v182 = vand.u32 %v181, 4294901760
    %v183 = vsub.f32 %v181, %v182
    %v184 = vand.u32 %v183, 4294901760
    %185 = vmatpush1.msra.mxu0 %v184
    %186 = vmatprep.subr.mxu0 0.0
    %v187 = vand.u32 %v49, 4294901760
    %v188 = vsub.f32 %v49, %v187
    %v189 = vand.u32 %v188, 4294901760
    %v190 = vsub.f32 %v188, %v189
    %v191 = vand.u32 %v190, 4294901760
    %192 = vmatpush1.msra.mxu0 %v191
    %193 = vmatprep.subr.mxu0 0.0
    %v194 = vand.u32 %v50, 4294901760
    %v195 = vsub.f32 %v50, %v194
    %v196 = vand.u32 %v195, 4294901760
    %v197 = vsub.f32 %v195, %v196
    %v198 = vand.u32 %v197, 4294901760
    %199 = vmatpush1.msra.mxu0 %v198
    %200 = vmatprep.subr.mxu0 0.0
    %v201 = vand.u32 %v51, 4294901760
    %v202 = vsub.f32 %v51, %v201
    %v203 = vand.u32 %v202, 4294901760
    %v204 = vsub.f32 %v202, %v203
    %v205 = vand.u32 %v204, 4294901760
    %206 = vmatpush1.msra.mxu0 %v205
    %207 = vmatprep.subr.mxu0 0.0
    %v208 = vand.u32 %v52, 4294901760
    %v209 = vsub.f32 %v52, %v208
    %v210 = vand.u32 %v209, 4294901760
    %v211 = vsub.f32 %v209, %v210
    %v212 = vand.u32 %v211, 4294901760
    %213 = vmatpush1.msra.mxu0 %v212
    %214 = vmatprep.subr.mxu0 0.0
    %v215 = vand.u32 %v53, 4294901760
    %v216 = vsub.f32 %v53, %v215
    %v217 = vand.u32 %v216, 4294901760
    %v218 = vsub.f32 %v216, %v217
    %v219 = vand.u32 %v218, 4294901760
    %220 = vmatpush1.msra.mxu0 %v219
    %221 = vmatprep.subr.mxu0 0.0
    %v222 = vand.u32 %v54, 4294901760
    %v223 = vsub.f32 %v54, %v222
    %v224 = vand.u32 %v223, 4294901760
    %v225 = vsub.f32 %v223, %v224
    %v226 = vand.u32 %v225, 4294901760
    %227 = vmatpush1.msra.mxu0 %v226
    %228 = vmatprep.subr.mxu0 0.0
    %v229 = vand.u32 %v55, 4294901760
    %v230 = vsub.f32 %v55, %v229
    %v231 = vand.u32 %v230, 4294901760
    %v232 = vsub.f32 %v230, %v231
    %v233 = vand.u32 %v232, 4294901760
    %234 = vmatpush1.msra.mxu0 %v233
    %235 = vmatprep.subr.mxu0 0.0
    %v236 = vand.u32 %v56, 4294901760
    %v237 = vsub.f32 %v56, %v236
    %v238 = vand.u32 %v237, 4294901760
    %v239 = vsub.f32 %v237, %v238
    %v240 = vand.u32 %v239, 4294901760
    %241 = vmatpush1.msra.mxu0 %v240
    %242 = vmatprep.subr.mxu0 0.0
    %v243 = vand.u32 %v57, 4294901760
    %v244 = vsub.f32 %v57, %v243
    %v245 = vand.u32 %v244, 4294901760
    %v246 = vsub.f32 %v244, %v245
    %v247 = vand.u32 %v246, 4294901760
    %248 = vmatpush1.msra.mxu0 %v247
    %249 = vmatprep.subr.mxu0 0.0
    %v250 = vand.u32 %v58, 4294901760
    %v251 = vsub.f32 %v58, %v250
    %v252 = vand.u32 %v251, 4294901760
    %v253 = vsub.f32 %v251, %v252
    %v254 = vand.u32 %v253, 4294901760
    %255 = vmatpush1.msra.mxu0 %v254
    %256 = vmatprep.subr.mxu0 0.0
    %v257 = vand.u32 %v59, 4294901760
    %v258 = vsub.f32 %v59, %v257
    %v259 = vand.u32 %v258, 4294901760
    %v260 = vsub.f32 %v258, %v259
    %v261 = vand.u32 %v260, 4294901760
    %262 = vmatpush1.msra.mxu0 %v261
    %263 = vmatprep.subr.mxu0 0.0
    %264 = vmatpush1.msra.mxu0 0.0
    %265 = vmatprep.subr.mxu0 0.0
    %266 = vmatpush1.msra.mxu0 0.0
    %267 = vmatprep.subr.mxu0 0.0
    %268 = vmatpush1.msra.mxu0 0.0
    %269 = vmatprep.subr.mxu0 0.0
    %270 = vmatpush1.msra.mxu0 0.0
    %271 = vmatprep.subr.mxu0 0.0
    %272 = vmatpush1.msra.mxu0 0.0
    %273 = vmatprep.subr.mxu0 0.0
    %274 = vmatpush1.msra.mxu0 0.0
    %275 = vmatprep.subr.mxu0 0.0
    %276 = vmatpush1.msra.mxu0 0.0
    %277 = vmatprep.subr.mxu0 0.0
    %278 = vmatpush1.msra.mxu0 0.0
    %279 = vmatprep.subr.mxu0 0.0
    %280 = vmatpush1.msra.mxu0 0.0
    %281 = vmatprep.subr.mxu0 0.0
    %282 = vmatpush1.msra.mxu0 0.0
    %283 = vmatprep.subr.mxu0 0.0
    %284 = vmatpush1.msra.mxu0 0.0
    %285 = vmatprep.subr.mxu0 0.0
    %286 = vmatpush1.msra.mxu0 0.0
    %287 = vmatprep.subr.mxu0 0.0
    %288 = vmatpush1.msra.mxu0 0.0
    %289 = vmatprep.subr.mxu0 0.0
    %290 = vmatpush1.msra.mxu0 0.0
    %291 = vmatprep.subr.mxu0 0.0
    %292 = vmatpush1.msra.mxu0 0.0
    %293 = vmatprep.subr.mxu0 0.0
    %294 = vmatpush1.msra.mxu0 0.0
    %295 = vmatprep.mubr.f32.mxu0 0.0
    %v296 = vand.u32 %v43, 4294901760
    %297 = vmatmul.mubr.f32.gmra.mrb[0].mxu0 %v296
    %v298 = vpop.f32.mrb[0].mxu0
    %v299 = vadd.f32 %v148, %v298
    %v300 = vpop.f32.mrb[0].mxu0
    %301 = vdwg.mxu0
    %302 = vmatprep.subr.mxu0 0.0
    %v303 = vand.u32 %v44, 4294901760
    %v304 = vsub.f32 %v44, %v303
    %305 = vmatpush1.msra.mxu0 %v304
    %306 = vmatprep.subr.mxu0 0.0
    %v307 = vand.u32 %v45, 4294901760
    %v308 = vsub.f32 %v45, %v307
    %309 = vmatpush1.msra.mxu0 %v308
    %310 = vmatprep.subr.mxu0 0.0
    %v311 = vand.u32 %v46, 4294901760
    %v312 = vsub.f32 %v46, %v311
    %313 = vmatpush1.msra.mxu0 %v312
    %314 = vmatprep.subr.mxu0 0.0
    %v315 = vand.u32 %v47, 4294901760
    %v316 = vsub.f32 %v47, %v315
    %317 = vmatpush1.msra.mxu0 %v316
    %318 = vmatprep.subr.mxu0 0.0
    %v319 = vand.u32 %v48, 4294901760
    %v320 = vsub.f32 %v48, %v319
    %321 = vmatpush1.msra.mxu0 %v320
    %322 = vmatprep.subr.mxu0 0.0
    %v323 = vand.u32 %v49, 4294901760
    %v324 = vsub.f32 %v49, %v323
    %325 = vmatpush1.msra.mxu0 %v324
    %326 = vmatprep.subr.mxu0 0.0
    %v327 = vand.u32 %v50, 4294901760
    %v328 = vsub.f32 %v50, %v327
    %329 = vmatpush1.msra.mxu0 %v328
    %330 = vmatprep.subr.mxu0 0.0
    %v331 = vand.u32 %v51, 4294901760
    %v332 = vsub.f32 %v51, %v331
    %333 = vmatpush1.msra.mxu0 %v332
    %334 = vmatprep.subr.mxu0 0.0
    %v335 = vand.u32 %v52, 4294901760
    %v336 = vsub.f32 %v52, %v335
    %337 = vmatpush1.msra.mxu0 %v336
    %338 = vmatprep.subr.mxu0 0.0
    %v339 = vand.u32 %v53, 4294901760
    %v340 = vsub.f32 %v53, %v339
    %341 = vmatpush1.msra.mxu0 %v340
    %342 = vmatprep.subr.mxu0 0.0
    %v343 = vand.u32 %v54, 4294901760
    %v344 = vsub.f32 %v54, %v343
    %345 = vmatpush1.msra.mxu0 %v344
    %346 = vmatprep.subr.mxu0 0.0
    %v347 = vand.u32 %v55, 4294901760
    %v348 = vsub.f32 %v55, %v347
    %349 = vmatpush1.msra.mxu0 %v348
    %350 = vmatprep.subr.mxu0 0.0
    %v351 = vand.u32 %v56, 4294901760
    %v352 = vsub.f32 %v56, %v351
    %353 = vmatpush1.msra.mxu0 %v352
    %354 = vmatprep.subr.mxu0 0.0
    %v355 = vand.u32 %v57, 4294901760
    %v356 = vsub.f32 %v57, %v355
    %357 = vmatpush1.msra.mxu0 %v356
    %358 = vmatprep.subr.mxu0 0.0
    %v359 = vand.u32 %v58, 4294901760
    %v360 = vsub.f32 %v58, %v359
    %361 = vmatpush1.msra.mxu0 %v360
    %362 = vmatprep.subr.mxu0 0.0
    %v363 = vand.u32 %v59, 4294901760
    %v364 = vsub.f32 %v59, %v363
    %365 = vmatpush1.msra.mxu0 %v364
    %366 = vmatprep.subr.mxu0 0.0
    %367 = vmatpush1.msra.mxu0 0.0
    %368 = vmatprep.subr.mxu0 0.0
    %369 = vmatpush1.msra.mxu0 0.0
    %370 = vmatprep.subr.mxu0 0.0
    %371 = vmatpush1.msra.mxu0 0.0
    %372 = vmatprep.subr.mxu0 0.0
    %373 = vmatpush1.msra.mxu0 0.0
    %374 = vmatprep.subr.mxu0 0.0
    %375 = vmatpush1.msra.mxu0 0.0
    %376 = vmatprep.subr.mxu0 0.0
    %377 = vmatpush1.msra.mxu0 0.0
    %378 = vmatprep.subr.mxu0 0.0
    %379 = vmatpush1.msra.mxu0 0.0
    %380 = vmatprep.subr.mxu0 0.0
    %381 = vmatpush1.msra.mxu0 0.0
    %382 = vmatprep.subr.mxu0 0.0
    %383 = vmatpush1.msra.mxu0 0.0
    %384 = vmatprep.subr.mxu0 0.0
    %385 = vmatpush1.msra.mxu0 0.0
    %386 = vmatprep.subr.mxu0 0.0
    %387 = vmatpush1.msra.mxu0 0.0
    %388 = vmatprep.subr.mxu0 0.0
    %389 = vmatpush1.msra.mxu0 0.0
    %390 = vmatprep.subr.mxu0 0.0
    %391 = vmatpush1.msra.mxu0 0.0
    %392 = vmatprep.subr.mxu0 0.0
    %393 = vmatpush1.msra.mxu0 0.0
    %394 = vmatprep.subr.mxu0 0.0
    %395 = vmatpush1.msra.mxu0 0.0
    %396 = vmatprep.subr.mxu0 0.0
    %397 = vmatpush1.msra.mxu0 0.0
    %398 = vmatprep.mubr.f32.mxu0 0.0
    %v399 = vand.u32 %v43, 4294901760
    %v400 = vsub.f32 %v43, %v399
    %401 = vmatmul.mubr.f32.gmra.mrb[0].mxu0 %v400
    %v402 = vpop.f32.mrb[0].mxu0
    %v403 = vadd.f32 %v299, %v402
    %v404 = vpop.f32.mrb[0].mxu0
    %405 = vdwg.mxu0
    %406 = vmatprep.subr.mxu0 0.0
    %v407 = vand.u32 %v44, 4294901760
    %408 = vmatpush1.msra.mxu0 %v407
    %409 = vmatprep.subr.mxu0 0.0
    %v410 = vand.u32 %v45, 4294901760
    %411 = vmatpush1.msra.mxu0 %v410
    %412 = vmatprep.subr.mxu0 0.0
    %v413 = vand.u32 %v46, 4294901760
    %414 = vmatpush1.msra.mxu0 %v413
    %415 = vmatprep.subr.mxu0 0.0
    %v416 = vand.u32 %v47, 4294901760
    %417 = vmatpush1.msra.mxu0 %v416
    %418 = vmatprep.subr.mxu0 0.0
    %v419 = vand.u32 %v48, 4294901760
    %420 = vmatpush1.msra.mxu0 %v419
    %421 = vmatprep.subr.mxu0 0.0
    %v422 = vand.u32 %v49, 4294901760
    %423 = vmatpush1.msra.mxu0 %v422
    %424 = vmatprep.subr.mxu0 0.0
    %v425 = vand.u32 %v50, 4294901760
    %426 = vmatpush1.msra.mxu0 %v425
    %427 = vmatprep.subr.mxu0 0.0
    %v428 = vand.u32 %v51, 4294901760
    %429 = vmatpush1.msra.mxu0 %v428
    %430 = vmatprep.subr.mxu0 0.0
    %v431 = vand.u32 %v52, 4294901760
    %432 = vmatpush1.msra.mxu0 %v431
    %433 = vmatprep.subr.mxu0 0.0
    %v434 = vand.u32 %v53, 4294901760
    %435 = vmatpush1.msra.mxu0 %v434
    %436 = vmatprep.subr.mxu0 0.0
    %v437 = vand.u32 %v54, 4294901760
    %438 = vmatpush1.msra.mxu0 %v437
    %439 = vmatprep.subr.mxu0 0.0
    %v440 = vand.u32 %v55, 4294901760
    %441 = vmatpush1.msra.mxu0 %v440
    %442 = vmatprep.subr.mxu0 0.0
    %v443 = vand.u32 %v56, 4294901760
    %444 = vmatpush1.msra.mxu0 %v443
    %445 = vmatprep.subr.mxu0 0.0
    %v446 = vand.u32 %v57, 4294901760
    %447 = vmatpush1.msra.mxu0 %v446
    %448 = vmatprep.subr.mxu0 0.0
    %v449 = vand.u32 %v58, 4294901760
    %450 = vmatpush1.msra.mxu0 %v449
    %451 = vmatprep.subr.mxu0 0.0
    %v452 = vand.u32 %v59, 4294901760
    %453 = vmatpush1.msra.mxu0 %v452
    %454 = vmatprep.subr.mxu0 0.0
    %455 = vmatpush1.msra.mxu0 0.0
    %456 = vmatprep.subr.mxu0 0.0
    %457 = vmatpush1.msra.mxu0 0.0
    %458 = vmatprep.subr.mxu0 0.0
    %459 = vmatpush1.msra.mxu0 0.0
    %460 = vmatprep.subr.mxu0 0.0
    %461 = vmatpush1.msra.mxu0 0.0
    %462 = vmatprep.subr.mxu0 0.0
    %463 = vmatpush1.msra.mxu0 0.0
    %464 = vmatprep.subr.mxu0 0.0
    %465 = vmatpush1.msra.mxu0 0.0
    %466 = vmatprep.subr.mxu0 0.0
    %467 = vmatpush1.msra.mxu0 0.0
    %468 = vmatprep.subr.mxu0 0.0
    %469 = vmatpush1.msra.mxu0 0.0
    %470 = vmatprep.subr.mxu0 0.0
    %471 = vmatpush1.msra.mxu0 0.0
    %472 = vmatprep.subr.mxu0 0.0
    %473 = vmatpush1.msra.mxu0 0.0
    %474 = vmatprep.subr.mxu0 0.0
    %475 = vmatpush1.msra.mxu0 0.0
    %476 = vmatprep.subr.mxu0 0.0
    %477 = vmatpush1.msra.mxu0 0.0
    %478 = vmatprep.subr.mxu0 0.0
    %479 = vmatpush1.msra.mxu0 0.0
    %480 = vmatprep.subr.mxu0 0.0
    %481 = vmatpush1.msra.mxu0 0.0
    %482 = vmatprep.subr.mxu0 0.0
    %483 = vmatpush1.msra.mxu0 0.0
    %484 = vmatprep.subr.mxu0 0.0
    %485 = vmatpush1.msra.mxu0 0.0
    %486 = vmatprep.mubr.f32.mxu0 0.0
    %v487 = vand.u32 %v43, 4294901760
    %v488 = vsub.f32 %v43, %v487
    %v489 = vand.u32 %v488, 4294901760
    %490 = vmatmul.mubr.f32.gmra.mrb[0].mxu0 %v489
    %v491 = vpop.f32.mrb[0].mxu0
    %v492 = vadd.f32 %v403, %v491
    %v493 = vpop.f32.mrb[0].mxu0
    %494 = vdwg.mxu0
    %495 = vmatprep.subr.mxu0 0.0
    %v496 = vand.u32 %v44, 4294901760
    %v497 = vsub.f32 %v44, %v496
    %v498 = vand.u32 %v497, 4294901760
    %499 = vmatpush1.msra.mxu0 %v498
    %500 = vmatprep.subr.mxu0 0.0
    %v501 = vand.u32 %v45, 4294901760
    %v502 = vsub.f32 %v45, %v501
    %v503 = vand.u32 %v502, 4294901760
    %504 = vmatpush1.msra.mxu0 %v503
    %505 = vmatprep.subr.mxu0 0.0
    %v506 = vand.u32 %v46, 4294901760
    %v507 = vsub.f32 %v46, %v506
    %v508 = vand.u32 %v507, 4294901760
    %509 = vmatpush1.msra.mxu0 %v508
    %510 = vmatprep.subr.mxu0 0.0
    %v511 = vand.u32 %v47, 4294901760
    %v512 = vsub.f32 %v47, %v511
    %v513 = vand.u32 %v512, 4294901760
    %514 = vmatpush1.msra.mxu0 %v513
    %515 = vmatprep.subr.mxu0 0.0
    %v516 = vand.u32 %v48, 4294901760
    %v517 = vsub.f32 %v48, %v516
    %v518 = vand.u32 %v517, 4294901760
    %519 = vmatpush1.msra.mxu0 %v518
    %520 = vmatprep.subr.mxu0 0.0
    %v521 = vand.u32 %v49, 4294901760
    %v522 = vsub.f32 %v49, %v521
    %v523 = vand.u32 %v522, 4294901760
    %524 = vmatpush1.msra.mxu0 %v523
    %525 = vmatprep.subr.mxu0 0.0
    %v526 = vand.u32 %v50, 4294901760
    %v527 = vsub.f32 %v50, %v526
    %v528 = vand.u32 %v527, 4294901760
    %529 = vmatpush1.msra.mxu0 %v528
    %530 = vmatprep.subr.mxu0 0.0
    %v531 = vand.u32 %v51, 4294901760
    %v532 = vsub.f32 %v51, %v531
    %v533 = vand.u32 %v532, 4294901760
    %534 = vmatpush1.msra.mxu0 %v533
    %535 = vmatprep.subr.mxu0 0.0
    %v536 = vand.u32 %v52, 4294901760
    %v537 = vsub.f32 %v52, %v536
    %v538 = vand.u32 %v537, 4294901760
    %539 = vmatpush1.msra.mxu0 %v538
    %540 = vmatprep.subr.mxu0 0.0
    %v541 = vand.u32 %v53, 4294901760
    %v542 = vsub.f32 %v53, %v541
    %v543 = vand.u32 %v542, 4294901760
    %544 = vmatpush1.msra.mxu0 %v543
    %545 = vmatprep.subr.mxu0 0.0
    %v546 = vand.u32 %v54, 4294901760
    %v547 = vsub.f32 %v54, %v546
    %v548 = vand.u32 %v547, 4294901760
    %549 = vmatpush1.msra.mxu0 %v548
    %550 = vmatprep.subr.mxu0 0.0
    %v551 = vand.u32 %v55, 4294901760
    %v552 = vsub.f32 %v55, %v551
    %v553 = vand.u32 %v552, 4294901760
    %554 = vmatpush1.msra.mxu0 %v553
    %555 = vmatprep.subr.mxu0 0.0
    %v556 = vand.u32 %v56, 4294901760
    %v557 = vsub.f32 %v56, %v556
    %v558 = vand.u32 %v557, 4294901760
    %559 = vmatpush1.msra.mxu0 %v558
    %560 = vmatprep.subr.mxu0 0.0
    %v561 = vand.u32 %v57, 4294901760
    %v562 = vsub.f32 %v57, %v561
    %v563 = vand.u32 %v562, 4294901760
    %564 = vmatpush1.msra.mxu0 %v563
    %565 = vmatprep.subr.mxu0 0.0
    %v566 = vand.u32 %v58, 4294901760
    %v567 = vsub.f32 %v58, %v566
    %v568 = vand.u32 %v567, 4294901760
    %569 = vmatpush1.msra.mxu0 %v568
    %570 = vmatprep.subr.mxu0 0.0
    %v571 = vand.u32 %v59, 4294901760
    %v572 = vsub.f32 %v59, %v571
    %v573 = vand.u32 %v572, 4294901760
    %574 = vmatpush1.msra.mxu0 %v573
    %575 = vmatprep.subr.mxu0 0.0
    %576 = vmatpush1.msra.mxu0 0.0
    %577 = vmatprep.subr.mxu0 0.0
    %578 = vmatpush1.msra.mxu0 0.0
    %579 = vmatprep.subr.mxu0 0.0
    %580 = vmatpush1.msra.mxu0 0.0
    %581 = vmatprep.subr.mxu0 0.0
    %582 = vmatpush1.msra.mxu0 0.0
    %583 = vmatprep.subr.mxu0 0.0
    %584 = vmatpush1.msra.mxu0 0.0
    %585 = vmatprep.subr.mxu0 0.0
    %586 = vmatpush1.msra.mxu0 0.0
    %587 = vmatprep.subr.mxu0 0.0
    %588 = vmatpush1.msra.mxu0 0.0
    %589 = vmatprep.subr.mxu0 0.0
    %590 = vmatpush1.msra.mxu0 0.0
    %591 = vmatprep.subr.mxu0 0.0
    %592 = vmatpush1.msra.mxu0 0.0
    %593 = vmatprep.subr.mxu0 0.0
    %594 = vmatpush1.msra.mxu0 0.0
    %595 = vmatprep.subr.mxu0 0.0
    %596 = vmatpush1.msra.mxu0 0.0
    %597 = vmatprep.subr.mxu0 0.0
    %598 = vmatpush1.msra.mxu0 0.0
    %599 = vmatprep.subr.mxu0 0.0
    %600 = vmatpush1.msra.mxu0 0.0
    %601 = vmatprep.subr.mxu0 0.0
    %602 = vmatpush1.msra.mxu0 0.0
    %603 = vmatprep.subr.mxu0 0.0
    %604 = vmatpush1.msra.mxu0 0.0
    %605 = vmatprep.subr.mxu0 0.0
    %606 = vmatpush1.msra.mxu0 0.0
    %607 = vmatprep.mubr.f32.mxu0 0.0
    %v608 = vand.u32 %v43, 4294901760
    %609 = vmatmul.mubr.f32.gmra.mrb[0].mxu0 %v608
    %v610 = vpop.f32.mrb[0].mxu0
    %v611 = vadd.f32 %v492, %v610
    %v612 = vpop.f32.mrb[0].mxu0
    %613 = vdwg.mxu0
    %614 = vmatprep.subr.mxu0 0.0
    %v615 = vand.u32 %v44, 4294901760
    %616 = vmatpush1.msra.mxu0 %v615
    %617 = vmatprep.subr.mxu0 0.0
    %v618 = vand.u32 %v45, 4294901760
    %619 = vmatpush1.msra.mxu0 %v618
    %620 = vmatprep.subr.mxu0 0.0
    %v621 = vand.u32 %v46, 4294901760
    %622 = vmatpush1.msra.mxu0 %v621
    %623 = vmatprep.subr.mxu0 0.0
    %v624 = vand.u32 %v47, 4294901760
    %625 = vmatpush1.msra.mxu0 %v624
    %626 = vmatprep.subr.mxu0 0.0
    %v627 = vand.u32 %v48, 4294901760
    %628 = vmatpush1.msra.mxu0 %v627
    %629 = vmatprep.subr.mxu0 0.0
    %v630 = vand.u32 %v49, 4294901760
    %631 = vmatpush1.msra.mxu0 %v630
    %632 = vmatprep.subr.mxu0 0.0
    %v633 = vand.u32 %v50, 4294901760
    %634 = vmatpush1.msra.mxu0 %v633
    %635 = vmatprep.subr.mxu0 0.0
    %v636 = vand.u32 %v51, 4294901760
    %637 = vmatpush1.msra.mxu0 %v636
    %638 = vmatprep.subr.mxu0 0.0
    %v639 = vand.u32 %v52, 4294901760
    %640 = vmatpush1.msra.mxu0 %v639
    %641 = vmatprep.subr.mxu0 0.0
    %v642 = vand.u32 %v53, 4294901760
    %643 = vmatpush1.msra.mxu0 %v642
    %644 = vmatprep.subr.mxu0 0.0
    %v645 = vand.u32 %v54, 4294901760
    %646 = vmatpush1.msra.mxu0 %v645
    %647 = vmatprep.subr.mxu0 0.0
    %v648 = vand.u32 %v55, 4294901760
    %649 = vmatpush1.msra.mxu0 %v648
    %650 = vmatprep.subr.mxu0 0.0
    %v651 = vand.u32 %v56, 4294901760
    %652 = vmatpush1.msra.mxu0 %v651
    %653 = vmatprep.subr.mxu0 0.0
    %v654 = vand.u32 %v57, 4294901760
    %655 = vmatpush1.msra.mxu0 %v654
    %656 = vmatprep.subr.mxu0 0.0
    %v657 = vand.u32 %v58, 4294901760
    %658 = vmatpush1.msra.mxu0 %v657
    %659 = vmatprep.subr.mxu0 0.0
    %v660 = vand.u32 %v59, 4294901760
    %661 = vmatpush1.msra.mxu0 %v660
    %662 = vmatprep.subr.mxu0 0.0
    %663 = vmatpush1.msra.mxu0 0.0
    %664 = vmatprep.subr.mxu0 0.0
    %665 = vmatpush1.msra.mxu0 0.0
    %666 = vmatprep.subr.mxu0 0.0
    %667 = vmatpush1.msra.mxu0 0.0
    %668 = vmatprep.subr.mxu0 0.0
    %669 = vmatpush1.msra.mxu0 0.0
    %670 = vmatprep.subr.mxu0 0.0
    %671 = vmatpush1.msra.mxu0 0.0
    %672 = vmatprep.subr.mxu0 0.0
    %673 = vmatpush1.msra.mxu0 0.0
    %674 = vmatprep.subr.mxu0 0.0
    %675 = vmatpush1.msra.mxu0 0.0
    %676 = vmatprep.subr.mxu0 0.0
    %677 = vmatpush1.msra.mxu0 0.0
    %678 = vmatprep.subr.mxu0 0.0
    %679 = vmatpush1.msra.mxu0 0.0
    %680 = vmatprep.subr.mxu0 0.0
    %681 = vmatpush1.msra.mxu0 0.0
    %682 = vmatprep.subr.mxu0 0.0
    %683 = vmatpush1.msra.mxu0 0.0
    %684 = vmatprep.subr.mxu0 0.0
    %685 = vmatpush1.msra.mxu0 0.0
    %686 = vmatprep.subr.mxu0 0.0
    %687 = vmatpush1.msra.mxu0 0.0
    %688 = vmatprep.subr.mxu0 0.0
    %689 = vmatpush1.msra.mxu0 0.0
    %690 = vmatprep.subr.mxu0 0.0
    %691 = vmatpush1.msra.mxu0 0.0
    %692 = vmatprep.subr.mxu0 0.0
    %693 = vmatpush1.msra.mxu0 0.0
    %694 = vmatprep.mubr.f32.mxu0 0.0
    %v695 = vand.u32 %v43, 4294901760
    %696 = vmatmul.mubr.f32.gmra.mrb[0].mxu0 %v695
    %v697 = vpop.f32.mrb[0].mxu0
    %v698 = vadd.f32 %v611, %v697
    %v699 = vpop.f32.mrb[0].mxu0
    %700 = vdwg.mxu0
    %v701 = vmul.f32 %v698, 0.03125
    %v702 = vsub.f32 %v43, %v701
    %v703 = vmul.f32 %v702, %v702
    %704 = vmatprep.subr.mxu0 0.0
    %v705 = vand.u32 %v44, 4294901760
    %706 = vmatpush1.msra.mxu0 %v705
    %707 = vmatprep.subr.mxu0 0.0
    %v708 = vand.u32 %v45, 4294901760
    %709 = vmatpush1.msra.mxu0 %v708
    %710 = vmatprep.subr.mxu0 0.0
    %v711 = vand.u32 %v46, 4294901760
    %712 = vmatpush1.msra.mxu0 %v711
    %713 = vmatprep.subr.mxu0 0.0
    %v714 = vand.u32 %v47, 4294901760
    %715 = vmatpush1.msra.mxu0 %v714
    %716 = vmatprep.subr.mxu0 0.0
    %v717 = vand.u32 %v48, 4294901760
    %718 = vmatpush1.msra.mxu0 %v717
    %719 = vmatprep.subr.mxu0 0.0
    %v720 = vand.u32 %v49, 4294901760
    %721 = vmatpush1.msra.mxu0 %v720
    %722 = vmatprep.subr.mxu0 0.0
    %v723 = vand.u32 %v50, 4294901760
    %724 = vmatpush1.msra.mxu0 %v723
    %725 = vmatprep.subr.mxu0 0.0
    %v726 = vand.u32 %v51, 4294901760
    %727 = vmatpush1.msra.mxu0 %v726
    %728 = vmatprep.subr.mxu0 0.0
    %v729 = vand.u32 %v52, 4294901760
    %730 = vmatpush1.msra.mxu0 %v729
    %731 = vmatprep.subr.mxu0 0.0
    %v732 = vand.u32 %v53, 4294901760
    %733 = vmatpush1.msra.mxu0 %v732
    %734 = vmatprep.subr.mxu0 0.0
    %v735 = vand.u32 %v54, 4294901760
    %736 = vmatpush1.msra.mxu0 %v735
    %737 = vmatprep.subr.mxu0 0.0
    %v738 = vand.u32 %v55, 4294901760
    %739 = vmatpush1.msra.mxu0 %v738
    %740 = vmatprep.subr.mxu0 0.0
    %v741 = vand.u32 %v56, 4294901760
    %742 = vmatpush1.msra.mxu0 %v741
    %743 = vmatprep.subr.mxu0 0.0
    %v744 = vand.u32 %v57, 4294901760
    %745 = vmatpush1.msra.mxu0 %v744
    %746 = vmatprep.subr.mxu0 0.0
    %v747 = vand.u32 %v58, 4294901760
    %748 = vmatpush1.msra.mxu0 %v747
    %749 = vmatprep.subr.mxu0 0.0
    %v750 = vand.u32 %v59, 4294901760
    %751 = vmatpush1.msra.mxu0 %v750
    %752 = vmatprep.subr.mxu0 0.0
    %753 = vmatpush1.msra.mxu0 0.0
    %754 = vmatprep.subr.mxu0 0.0
    %755 = vmatpush1.msra.mxu0 0.0
    %756 = vmatprep.subr.mxu0 0.0
    %757 = vmatpush1.msra.mxu0 0.0
    %758 = vmatprep.subr.mxu0 0.0
    %759 = vmatpush1.msra.mxu0 0.0
    %760 = vmatprep.subr.mxu0 0.0
    %761 = vmatpush1.msra.mxu0 0.0
    %762 = vmatprep.subr.mxu0 0.0
    %763 = vmatpush1.msra.mxu0 0.0
    %764 = vmatprep.subr.mxu0 0.0
    %765 = vmatpush1.msra.mxu0 0.0
    %766 = vmatprep.subr.mxu0 0.0
    %767 = vmatpush1.msra.mxu0 0.0
    %768 = vmatprep.subr.mxu0 0.0
    %769 = vmatpush1.msra.mxu0 0.0
    %770 = vmatprep.subr.mxu0 0.0
    %771 = vmatpush1.msra.mxu0 0.0
    %772 = vmatprep.subr.mxu0 0.0
    %773 = vmatpush1.msra.mxu0 0.0
    %774 = vmatprep.subr.mxu0 0.0
    %775 = vmatpush1.msra.mxu0 0.0
    %776 = vmatprep.subr.mxu0 0.0
    %777 = vmatpush1.msra.mxu0 0.0
    %778 = vmatprep.subr.mxu0 0.0
    %779 = vmatpush1.msra.mxu0 0.0
    %780 = vmatprep.subr.mxu0 0.0
    %781 = vmatpush1.msra.mxu0 0.0
    %782 = vmatprep.subr.mxu0 0.0
    %783 = vmatpush1.msra.mxu0 0.0
    %784 = vmatprep.mubr.f32.mxu0 0.0
    %v785 = vand.u32 %v703, 4294901760
    %v786 = vsub.f32 %v703, %v785
    %v787 = vand.u32 %v786, 4294901760
    %v788 = vsub.f32 %v786, %v787
    %v789 = vand.u32 %v788, 4294901760
    %790 = vmatmul.mubr.f32.gmra.mrb[0].mxu0 %v789
    %v791 = vpop.f32.mrb[0].mxu0
    %v792 = vadd.f32 0.0, %v791
    %v793 = vpop.f32.mrb[0].mxu0
    %794 = vdwg.mxu0
    %795 = vmatprep.subr.mxu0 0.0
    %v796 = vand.u32 %v44, 4294901760
    %v797 = vsub.f32 %v44, %v796
    %v798 = vand.u32 %v797, 4294901760
    %v799 = vsub.f32 %v797, %v798
    %v800 = vand.u32 %v799, 4294901760
    %801 = vmatpush1.msra.mxu0 %v800
    %802 = vmatprep.subr.mxu0 0.0
    %v803 = vand.u32 %v45, 4294901760
    %v804 = vsub.f32 %v45, %v803
    %v805 = vand.u32 %v804, 4294901760
    %v806 = vsub.f32 %v804, %v805
    %v807 = vand.u32 %v806, 4294901760
    %808 = vmatpush1.msra.mxu0 %v807
    %809 = vmatprep.subr.mxu0 0.0
    %v810 = vand.u32 %v46, 4294901760
    %v811 = vsub.f32 %v46, %v810
    %v812 = vand.u32 %v811, 4294901760
    %v813 = vsub.f32 %v811, %v812
    %v814 = vand.u32 %v813, 4294901760
    %815 = vmatpush1.msra.mxu0 %v814
    %816 = vmatprep.subr.mxu0 0.0
    %v817 = vand.u32 %v47, 4294901760
    %v818 = vsub.f32 %v47, %v817
    %v819 = vand.u32 %v818, 4294901760
    %v820 = vsub.f32 %v818, %v819
    %v821 = vand.u32 %v820, 4294901760
    %822 = vmatpush1.msra.mxu0 %v821
    %823 = vmatprep.subr.mxu0 0.0
    %v824 = vand.u32 %v48, 4294901760
    %v825 = vsub.f32 %v48, %v824
    %v826 = vand.u32 %v825, 4294901760
    %v827 = vsub.f32 %v825, %v826
    %v828 = vand.u32 %v827, 4294901760
    %829 = vmatpush1.msra.mxu0 %v828
    %830 = vmatprep.subr.mxu0 0.0
    %v831 = vand.u32 %v49, 4294901760
    %v832 = vsub.f32 %v49, %v831
    %v833 = vand.u32 %v832, 4294901760
    %v834 = vsub.f32 %v832, %v833
    %v835 = vand.u32 %v834, 4294901760
    %836 = vmatpush1.msra.mxu0 %v835
    %837 = vmatprep.subr.mxu0 0.0
    %v838 = vand.u32 %v50, 4294901760
    %v839 = vsub.f32 %v50, %v838
    %v840 = vand.u32 %v839, 4294901760
    %v841 = vsub.f32 %v839, %v840
    %v842 = vand.u32 %v841, 4294901760
    %843 = vmatpush1.msra.mxu0 %v842
    %844 = vmatprep.subr.mxu0 0.0
    %v845 = vand.u32 %v51, 4294901760
    %v846 = vsub.f32 %v51, %v845
    %v847 = vand.u32 %v846, 4294901760
    %v848 = vsub.f32 %v846, %v847
    %v849 = vand.u32 %v848, 4294901760
    %850 = vmatpush1.msra.mxu0 %v849
    %851 = vmatprep.subr.mxu0 0.0
    %v852 = vand.u32 %v52, 4294901760
    %v853 = vsub.f32 %v52, %v852
    %v854 = vand.u32 %v853, 4294901760
    %v855 = vsub.f32 %v853, %v854
    %v856 = vand.u32 %v855, 4294901760
    %857 = vmatpush1.msra.mxu0 %v856
    %858 = vmatprep.subr.mxu0 0.0
    %v859 = vand.u32 %v53, 4294901760
    %v860 = vsub.f32 %v53, %v859
    %v861 = vand.u32 %v860, 4294901760
    %v862 = vsub.f32 %v860, %v861
    %v863 = vand.u32 %v862, 4294901760
    %864 = vmatpush1.msra.mxu0 %v863
    %865 = vmatprep.subr.mxu0 0.0
    %v866 = vand.u32 %v54, 4294901760
    %v867 = vsub.f32 %v54, %v866
    %v868 = vand.u32 %v867, 4294901760
    %v869 = vsub.f32 %v867, %v868
    %v870 = vand.u32 %v869, 4294901760
    %871 = vmatpush1.msra.mxu0 %v870
    %872 = vmatprep.subr.mxu0 0.0
    %v873 = vand.u32 %v55, 4294901760
    %v874 = vsub.f32 %v55, %v873
    %v875 = vand.u32 %v874, 4294901760
    %v876 = vsub.f32 %v874, %v875
    %v877 = vand.u32 %v876, 4294901760
    %878 = vmatpush1.msra.mxu0 %v877
    %879 = vmatprep.subr.mxu0 0.0
    %v880 = vand.u32 %v56, 4294901760
    %v881 = vsub.f32 %v56, %v880
    %v882 = vand.u32 %v881, 4294901760
    %v883 = vsub.f32 %v881, %v882
    %v884 = vand.u32 %v883, 4294901760
    %885 = vmatpush1.msra.mxu0 %v884
    %886 = vmatprep.subr.mxu0 0.0
    %v887 = vand.u32 %v57, 4294901760
    %v888 = vsub.f32 %v57, %v887
    %v889 = vand.u32 %v888, 4294901760
    %v890 = vsub.f32 %v888, %v889
    %v891 = vand.u32 %v890, 4294901760
    %892 = vmatpush1.msra.mxu0 %v891
    %893 = vmatprep.subr.mxu0 0.0
    %v894 = vand.u32 %v58, 4294901760
    %v895 = vsub.f32 %v58, %v894
    %v896 = vand.u32 %v895, 4294901760
    %v897 = vsub.f32 %v895, %v896
    %v898 = vand.u32 %v897, 4294901760
    %899 = vmatpush1.msra.mxu0 %v898
    %900 = vmatprep.subr.mxu0 0.0
    %v901 = vand.u32 %v59, 4294901760
    %v902 = vsub.f32 %v59, %v901
    %v903 = vand.u32 %v902, 4294901760
    %v904 = vsub.f32 %v902, %v903
    %v905 = vand.u32 %v904, 4294901760
    %906 = vmatpush1.msra.mxu0 %v905
    %907 = vmatprep.subr.mxu0 0.0
    %908 = vmatpush1.msra.mxu0 0.0
    %909 = vmatprep.subr.mxu0 0.0
    %910 = vmatpush1.msra.mxu0 0.0
    %911 = vmatprep.subr.mxu0 0.0
    %912 = vmatpush1.msra.mxu0 0.0
    %913 = vmatprep.subr.mxu0 0.0
    %914 = vmatpush1.msra.mxu0 0.0
    %915 = vmatprep.subr.mxu0 0.0
    %916 = vmatpush1.msra.mxu0 0.0
    %917 = vmatprep.subr.mxu0 0.0
    %918 = vmatpush1.msra.mxu0 0.0
    %919 = vmatprep.subr.mxu0 0.0
    %920 = vmatpush1.msra.mxu0 0.0
    %921 = vmatprep.subr.mxu0 0.0
    %922 = vmatpush1.msra.mxu0 0.0
    %923 = vmatprep.subr.mxu0 0.0
    %924 = vmatpush1.msra.mxu0 0.0
    %925 = vmatprep.subr.mxu0 0.0
    %926 = vmatpush1.msra.mxu0 0.0
    %927 = vmatprep.subr.mxu0 0.0
    %928 = vmatpush1.msra.mxu0 0.0
    %929 = vmatprep.subr.mxu0 0.0
    %930 = vmatpush1.msra.mxu0 0.0
    %931 = vmatprep.subr.mxu0 0.0
    %932 = vmatpush1.msra.mxu0 0.0
    %933 = vmatprep.subr.mxu0 0.0
    %934 = vmatpush1.msra.mxu0 0.0
    %935 = vmatprep.subr.mxu0 0.0
    %936 = vmatpush1.msra.mxu0 0.0
    %937 = vmatprep.subr.mxu0 0.0
    %938 = vmatpush1.msra.mxu0 0.0
    %939 = vmatprep.mubr.f32.mxu0 0.0
    %v940 = vand.u32 %v703, 4294901760
    %941 = vmatmul.mubr.f32.gmra.mrb[0].mxu0 %v940
    %v942 = vpop.f32.mrb[0].mxu0
    %v943 = vadd.f32 %v792, %v942
    %v944 = vpop.f32.mrb[0].mxu0
    %945 = vdwg.mxu0
    %946 = vmatprep.subr.mxu0 0.0
    %v947 = vand.u32 %v44, 4294901760
    %v948 = vsub.f32 %v44, %v947
    %949 = vmatpush1.msra.mxu0 %v948
    %950 = vmatprep.subr.mxu0 0.0
    %v951 = vand.u32 %v45, 4294901760
    %v952 = vsub.f32 %v45, %v951
    %953 = vmatpush1.msra.mxu0 %v952
    %954 = vmatprep.subr.mxu0 0.0
    %v955 = vand.u32 %v46, 4294901760
    %v956 = vsub.f32 %v46, %v955
    %957 = vmatpush1.msra.mxu0 %v956
    %958 = vmatprep.subr.mxu0 0.0
    %v959 = vand.u32 %v47, 4294901760
    %v960 = vsub.f32 %v47, %v959
    %961 = vmatpush1.msra.mxu0 %v960
    %962 = vmatprep.subr.mxu0 0.0
    %v963 = vand.u32 %v48, 4294901760
    %v964 = vsub.f32 %v48, %v963
    %965 = vmatpush1.msra.mxu0 %v964
    %966 = vmatprep.subr.mxu0 0.0
    %v967 = vand.u32 %v49, 4294901760
    %v968 = vsub.f32 %v49, %v967
    %969 = vmatpush1.msra.mxu0 %v968
    %970 = vmatprep.subr.mxu0 0.0
    %v971 = vand.u32 %v50, 4294901760
    %v972 = vsub.f32 %v50, %v971
    %973 = vmatpush1.msra.mxu0 %v972
    %974 = vmatprep.subr.mxu0 0.0
    %v975 = vand.u32 %v51, 4294901760
    %v976 = vsub.f32 %v51, %v975
    %977 = vmatpush1.msra.mxu0 %v976
    %978 = vmatprep.subr.mxu0 0.0
    %v979 = vand.u32 %v52, 4294901760
    %v980 = vsub.f32 %v52, %v979
    %981 = vmatpush1.msra.mxu0 %v980
    %982 = vmatprep.subr.mxu0 0.0
    %v983 = vand.u32 %v53, 4294901760
    %v984 = vsub.f32 %v53, %v983
    %985 = vmatpush1.msra.mxu0 %v984
    %986 = vmatprep.subr.mxu0 0.0
    %v987 = vand.u32 %v54, 4294901760
    %v988 = vsub.f32 %v54, %v987
    %989 = vmatpush1.msra.mxu0 %v988
    %990 = vmatprep.subr.mxu0 0.0
    %v991 = vand.u32 %v55, 4294901760
    %v992 = vsub.f32 %v55, %v991
    %993 = vmatpush1.msra.mxu0 %v992
    %994 = vmatprep.subr.mxu0 0.0
    %v995 = vand.u32 %v56, 4294901760
    %v996 = vsub.f32 %v56, %v995
    %997 = vmatpush1.msra.mxu0 %v996
    %998 = vmatprep.subr.mxu0 0.0
    %v999 = vand.u32 %v57, 4294901760
    %v1000 = vsub.f32 %v57, %v999
    %1001 = vmatpush1.msra.mxu0 %v1000
    %1002 = vmatprep.subr.mxu0 0.0
    %v1003 = vand.u32 %v58, 4294901760
    %v1004 = vsub.f32 %v58, %v1003
    %1005 = vmatpush1.msra.mxu0 %v1004
    %1006 = vmatprep.subr.mxu0 0.0
    %v1007 = vand.u32 %v59, 4294901760
    %v1008 = vsub.f32 %v59, %v1007
    %1009 = vmatpush1.msra.mxu0 %v1008
    %1010 = vmatprep.subr.mxu0 0.0
    %1011 = vmatpush1.msra.mxu0 0.0
    %1012 = vmatprep.subr.mxu0 0.0
    %1013 = vmatpush1.msra.mxu0 0.0
    %1014 = vmatprep.subr.mxu0 0.0
    %1015 = vmatpush1.msra.mxu0 0.0
    %1016 = vmatprep.subr.mxu0 0.0
    %1017 = vmatpush1.msra.mxu0 0.0
    %1018 = vmatprep.subr.mxu0 0.0
    %1019 = vmatpush1.msra.mxu0 0.0
    %1020 = vmatprep.subr.mxu0 0.0
    %1021 = vmatpush1.msra.mxu0 0.0
    %1022 = vmatprep.subr.mxu0 0.0
    %1023 = vmatpush1.msra.mxu0 0.0
    %1024 = vmatprep.subr.mxu0 0.0
    %1025 = vmatpush1.msra.mxu0 0.0
    %1026 = vmatprep.subr.mxu0 0.0
    %1027 = vmatpush1.msra.mxu0 0.0
    %1028 = vmatprep.subr.mxu0 0.0
    %1029 = vmatpush1.msra.mxu0 0.0
    %1030 = vmatprep.subr.mxu0 0.0
    %1031 = vmatpush1.msra.mxu0 0.0
    %1032 = vmatprep.subr.mxu0 0.0
    %1033 = vmatpush1.msra.mxu0 0.0
    %1034 = vmatprep.subr.mxu0 0.0
    %1035 = vmatpush1.msra.mxu0 0.0
    %1036 = vmatprep.subr.mxu0 0.0
    %1037 = vmatpush1.msra.mxu0 0.0
    %1038 = vmatprep.subr.mxu0 0.0
    %1039 = vmatpush1.msra.mxu0 0.0
    %1040 = vmatprep.subr.mxu0 0.0
    %1041 = vmatpush1.msra.mxu0 0.0
    %1042 = vmatprep.mubr.f32.mxu0 0.0
    %v1043 = vand.u32 %v703, 4294901760
    %v1044 = vsub.f32 %v703, %v1043
    %1045 = vmatmul.mubr.f32.gmra.mrb[0].mxu0 %v1044
    %v1046 = vpop.f32.mrb[0].mxu0
    %v1047 = vadd.f32 %v943, %v1046
    %v1048 = vpop.f32.mrb[0].mxu0
    %1049 = vdwg.mxu0
    %1050 = vmatprep.subr.mxu0 0.0
    %v1051 = vand.u32 %v44, 4294901760
    %1052 = vmatpush1.msra.mxu0 %v1051
    %1053 = vmatprep.subr.mxu0 0.0
    %v1054 = vand.u32 %v45, 4294901760
    %1055 = vmatpush1.msra.mxu0 %v1054
    %1056 = vmatprep.subr.mxu0 0.0
    %v1057 = vand.u32 %v46, 4294901760
    %1058 = vmatpush1.msra.mxu0 %v1057
    %1059 = vmatprep.subr.mxu0 0.0
    %v1060 = vand.u32 %v47, 4294901760
    %1061 = vmatpush1.msra.mxu0 %v1060
    %1062 = vmatprep.subr.mxu0 0.0
    %v1063 = vand.u32 %v48, 4294901760
    %1064 = vmatpush1.msra.mxu0 %v1063
    %1065 = vmatprep.subr.mxu0 0.0
    %v1066 = vand.u32 %v49, 4294901760
    %1067 = vmatpush1.msra.mxu0 %v1066
    %1068 = vmatprep.subr.mxu0 0.0
    %v1069 = vand.u32 %v50, 4294901760
    %1070 = vmatpush1.msra.mxu0 %v1069
    %1071 = vmatprep.subr.mxu0 0.0
    %v1072 = vand.u32 %v51, 4294901760
    %1073 = vmatpush1.msra.mxu0 %v1072
    %1074 = vmatprep.subr.mxu0 0.0
    %v1075 = vand.u32 %v52, 4294901760
    %1076 = vmatpush1.msra.mxu0 %v1075
    %1077 = vmatprep.subr.mxu0 0.0
    %v1078 = vand.u32 %v53, 4294901760
    %1079 = vmatpush1.msra.mxu0 %v1078
    %1080 = vmatprep.subr.mxu0 0.0
    %v1081 = vand.u32 %v54, 4294901760
    %1082 = vmatpush1.msra.mxu0 %v1081
    %1083 = vmatprep.subr.mxu0 0.0
    %v1084 = vand.u32 %v55, 4294901760
    %1085 = vmatpush1.msra.mxu0 %v1084
    %1086 = vmatprep.subr.mxu0 0.0
    %v1087 = vand.u32 %v56, 4294901760
    %1088 = vmatpush1.msra.mxu0 %v1087
    %1089 = vmatprep.subr.mxu0 0.0
    %v1090 = vand.u32 %v57, 4294901760
    %1091 = vmatpush1.msra.mxu0 %v1090
    %1092 = vmatprep.subr.mxu0 0.0
    %v1093 = vand.u32 %v58, 4294901760
    %1094 = vmatpush1.msra.mxu0 %v1093
    %1095 = vmatprep.subr.mxu0 0.0
    %v1096 = vand.u32 %v59, 4294901760
    %1097 = vmatpush1.msra.mxu0 %v1096
    %1098 = vmatprep.subr.mxu0 0.0
    %1099 = vmatpush1.msra.mxu0 0.0
    %1100 = vmatprep.subr.mxu0 0.0
    %1101 = vmatpush1.msra.mxu0 0.0
    %1102 = vmatprep.subr.mxu0 0.0
    %1103 = vmatpush1.msra.mxu0 0.0
    %1104 = vmatprep.subr.mxu0 0.0
    %1105 = vmatpush1.msra.mxu0 0.0
    %1106 = vmatprep.subr.mxu0 0.0
    %1107 = vmatpush1.msra.mxu0 0.0
    %1108 = vmatprep.subr.mxu0 0.0
    %1109 = vmatpush1.msra.mxu0 0.0
    %1110 = vmatprep.subr.mxu0 0.0
    %1111 = vmatpush1.msra.mxu0 0.0
    %1112 = vmatprep.subr.mxu0 0.0
    %1113 = vmatpush1.msra.mxu0 0.0
    %1114 = vmatprep.subr.mxu0 0.0
    %1115 = vmatpush1.msra.mxu0 0.0
    %1116 = vmatprep.subr.mxu0 0.0
    %1117 = vmatpush1.msra.mxu0 0.0
    %1118 = vmatprep.subr.mxu0 0.0
    %1119 = vmatpush1.msra.mxu0 0.0
    %1120 = vmatprep.subr.mxu0 0.0
    %1121 = vmatpush1.msra.mxu0 0.0
    %1122 = vmatprep.subr.mxu0 0.0
    %1123 = vmatpush1.msra.mxu0 0.0
    %1124 = vmatprep.subr.mxu0 0.0
    %1125 = vmatpush1.msra.mxu0 0.0
    %1126 = vmatprep.subr.mxu0 0.0
    %1127 = vmatpush1.msra.mxu0 0.0
    %1128 = vmatprep.subr.mxu0 0.0
    %1129 = vmatpush1.msra.mxu0 0.0
    %1130 = vmatprep.mubr.f32.mxu0 0.0
    %v1131 = vand.u32 %v703, 4294901760
    %v1132 = vsub.f32 %v703, %v1131
    %v1133 = vand.u32 %v1132, 4294901760
    %1134 = vmatmul.mubr.f32.gmra.mrb[0].mxu0 %v1133
    %v1135 = vpop.f32.mrb[0].mxu0
    %v1136 = vadd.f32 %v1047, %v1135
    %v1137 = vpop.f32.mrb[0].mxu0
    %1138 = vdwg.mxu0
    %1139 = vmatprep.subr.mxu0 0.0
    %v1140 = vand.u32 %v44, 4294901760
    %v1141 = vsub.f32 %v44, %v1140
    %v1142 = vand.u32 %v1141, 4294901760
    %1143 = vmatpush1.msra.mxu0 %v1142
    %1144 = vmatprep.subr.mxu0 0.0
    %v1145 = vand.u32 %v45, 4294901760
    %v1146 = vsub.f32 %v45, %v1145
    %v1147 = vand.u32 %v1146, 4294901760
    %1148 = vmatpush1.msra.mxu0 %v1147
    %1149 = vmatprep.subr.mxu0 0.0
    %v1150 = vand.u32 %v46, 4294901760
    %v1151 = vsub.f32 %v46, %v1150
    %v1152 = vand.u32 %v1151, 4294901760
    %1153 = vmatpush1.msra.mxu0 %v1152
    %1154 = vmatprep.subr.mxu0 0.0
    %v1155 = vand.u32 %v47, 4294901760
    %v1156 = vsub.f32 %v47, %v1155
    %v1157 = vand.u32 %v1156, 4294901760
    %1158 = vmatpush1.msra.mxu0 %v1157
    %1159 = vmatprep.subr.mxu0 0.0
    %v1160 = vand.u32 %v48, 4294901760
    %v1161 = vsub.f32 %v48, %v1160
    %v1162 = vand.u32 %v1161, 4294901760
    %1163 = vmatpush1.msra.mxu0 %v1162
    %1164 = vmatprep.subr.mxu0 0.0
    %v1165 = vand.u32 %v49, 4294901760
    %v1166 = vsub.f32 %v49, %v1165
    %v1167 = vand.u32 %v1166, 4294901760
    %1168 = vmatpush1.msra.mxu0 %v1167
    %1169 = vmatprep.subr.mxu0 0.0
    %v1170 = vand.u32 %v50, 4294901760
    %v1171 = vsub.f32 %v50, %v1170
    %v1172 = vand.u32 %v1171, 4294901760
    %1173 = vmatpush1.msra.mxu0 %v1172
    %1174 = vmatprep.subr.mxu0 0.0
    %v1175 = vand.u32 %v51, 4294901760
    %v1176 = vsub.f32 %v51, %v1175
    %v1177 = vand.u32 %v1176, 4294901760
    %1178 = vmatpush1.msra.mxu0 %v1177
    %1179 = vmatprep.subr.mxu0 0.0
    %v1180 = vand.u32 %v52, 4294901760
    %v1181 = vsub.f32 %v52, %v1180
    %v1182 = vand.u32 %v1181, 4294901760
    %1183 = vmatpush1.msra.mxu0 %v1182
    %1184 = vmatprep.subr.mxu0 0.0
    %v1185 = vand.u32 %v53, 4294901760
    %v1186 = vsub.f32 %v53, %v1185
    %v1187 = vand.u32 %v1186, 4294901760
    %1188 = vmatpush1.msra.mxu0 %v1187
    %1189 = vmatprep.subr.mxu0 0.0
    %v1190 = vand.u32 %v54, 4294901760
    %v1191 = vsub.f32 %v54, %v1190
    %v1192 = vand.u32 %v1191, 4294901760
    %1193 = vmatpush1.msra.mxu0 %v1192
    %1194 = vmatprep.subr.mxu0 0.0
    %v1195 = vand.u32 %v55, 4294901760
    %v1196 = vsub.f32 %v55, %v1195
    %v1197 = vand.u32 %v1196, 4294901760
    %1198 = vmatpush1.msra.mxu0 %v1197
    %1199 = vmatprep.subr.mxu0 0.0
    %v1200 = vand.u32 %v56, 4294901760
    %v1201 = vsub.f32 %v56, %v1200
    %v1202 = vand.u32 %v1201, 4294901760
    %1203 = vmatpush1.msra.mxu0 %v1202
    %1204 = vmatprep.subr.mxu0 0.0
    %v1205 = vand.u32 %v57, 4294901760
    %v1206 = vsub.f32 %v57, %v1205
    %v1207 = vand.u32 %v1206, 4294901760
    %1208 = vmatpush1.msra.mxu0 %v1207
    %1209 = vmatprep.subr.mxu0 0.0
    %v1210 = vand.u32 %v58, 4294901760
    %v1211 = vsub.f32 %v58, %v1210
    %v1212 = vand.u32 %v1211, 4294901760
    %1213 = vmatpush1.msra.mxu0 %v1212
    %1214 = vmatprep.subr.mxu0 0.0
    %v1215 = vand.u32 %v59, 4294901760
    %v1216 = vsub.f32 %v59, %v1215
    %v1217 = vand.u32 %v1216, 4294901760
    %1218 = vmatpush1.msra.mxu0 %v1217
    %1219 = vmatprep.subr.mxu0 0.0
    %1220 = vmatpush1.msra.mxu0 0.0
    %1221 = vmatprep.subr.mxu0 0.0
    %1222 = vmatpush1.msra.mxu0 0.0
    %1223 = vmatprep.subr.mxu0 0.0
    %1224 = vmatpush1.msra.mxu0 0.0
    %1225 = vmatprep.subr.mxu0 0.0
    %1226 = vmatpush1.msra.mxu0 0.0
    %1227 = vmatprep.subr.mxu0 0.0
    %1228 = vmatpush1.msra.mxu0 0.0
    %1229 = vmatprep.subr.mxu0 0.0
    %1230 = vmatpush1.msra.mxu0 0.0
    %1231 = vmatprep.subr.mxu0 0.0
    %1232 = vmatpush1.msra.mxu0 0.0
    %1233 = vmatprep.subr.mxu0 0.0
    %1234 = vmatpush1.msra.mxu0 0.0
    %1235 = vmatprep.subr.mxu0 0.0
    %1236 = vmatpush1.msra.mxu0 0.0
    %1237 = vmatprep.subr.mxu0 0.0
    %1238 = vmatpush1.msra.mxu0 0.0
    %1239 = vmatprep.subr.mxu0 0.0
    %1240 = vmatpush1.msra.mxu0 0.0
    %1241 = vmatprep.subr.mxu0 0.0
    %1242 = vmatpush1.msra.mxu0 0.0
    %1243 = vmatprep.subr.mxu0 0.0
    %1244 = vmatpush1.msra.mxu0 0.0
    %1245 = vmatprep.subr.mxu0 0.0
    %1246 = vmatpush1.msra.mxu0 0.0
    %1247 = vmatprep.subr.mxu0 0.0
    %1248 = vmatpush1.msra.mxu0 0.0
    %1249 = vmatprep.subr.mxu0 0.0
    %1250 = vmatpush1.msra.mxu0 0.0
    %1251 = vmatprep.mubr.f32.mxu0 0.0
    %v1252 = vand.u32 %v703, 4294901760
    %1253 = vmatmul.mubr.f32.gmra.mrb[0].mxu0 %v1252
    %v1254 = vpop.f32.mrb[0].mxu0
    %v1255 = vadd.f32 %v1136, %v1254
    %v1256 = vpop.f32.mrb[0].mxu0
    %1257 = vdwg.mxu0
    %1258 = vmatprep.subr.mxu0 0.0
    %v1259 = vand.u32 %v44, 4294901760
    %1260 = vmatpush1.msra.mxu0 %v1259
    %1261 = vmatprep.subr.mxu0 0.0
    %v1262 = vand.u32 %v45, 4294901760
    %1263 = vmatpush1.msra.mxu0 %v1262
    %1264 = vmatprep.subr.mxu0 0.0
    %v1265 = vand.u32 %v46, 4294901760
    %1266 = vmatpush1.msra.mxu0 %v1265
    %1267 = vmatprep.subr.mxu0 0.0
    %v1268 = vand.u32 %v47, 4294901760
    %1269 = vmatpush1.msra.mxu0 %v1268
    %1270 = vmatprep.subr.mxu0 0.0
    %v1271 = vand.u32 %v48, 4294901760
    %1272 = vmatpush1.msra.mxu0 %v1271
    %1273 = vmatprep.subr.mxu0 0.0
    %v1274 = vand.u32 %v49, 4294901760
    %1275 = vmatpush1.msra.mxu0 %v1274
    %1276 = vmatprep.subr.mxu0 0.0
    %v1277 = vand.u32 %v50, 4294901760
    %1278 = vmatpush1.msra.mxu0 %v1277
    %1279 = vmatprep.subr.mxu0 0.0
    %v1280 = vand.u32 %v51, 4294901760
    %1281 = vmatpush1.msra.mxu0 %v1280
    %1282 = vmatprep.subr.mxu0 0.0
    %v1283 = vand.u32 %v52, 4294901760
    %1284 = vmatpush1.msra.mxu0 %v1283
    %1285 = vmatprep.subr.mxu0 0.0
    %v1286 = vand.u32 %v53, 4294901760
    %1287 = vmatpush1.msra.mxu0 %v1286
    %1288 = vmatprep.subr.mxu0 0.0
    %v1289 = vand.u32 %v54, 4294901760
    %1290 = vmatpush1.msra.mxu0 %v1289
    %1291 = vmatprep.subr.mxu0 0.0
    %v1292 = vand.u32 %v55, 4294901760
    %1293 = vmatpush1.msra.mxu0 %v1292
    %1294 = vmatprep.subr.mxu0 0.0
    %v1295 = vand.u32 %v56, 4294901760
    %1296 = vmatpush1.msra.mxu0 %v1295
    %1297 = vmatprep.subr.mxu0 0.0
    %v1298 = vand.u32 %v57, 4294901760
    %1299 = vmatpush1.msra.mxu0 %v1298
    %1300 = vmatprep.subr.mxu0 0.0
    %v1301 = vand.u32 %v58, 4294901760
    %1302 = vmatpush1.msra.mxu0 %v1301
    %1303 = vmatprep.subr.mxu0 0.0
    %v1304 = vand.u32 %v59, 4294901760
    %1305 = vmatpush1.msra.mxu0 %v1304
    %1306 = vmatprep.subr.mxu0 0.0
    %1307 = vmatpush1.msra.mxu0 0.0
    %1308 = vmatprep.subr.mxu0 0.0
    %1309 = vmatpush1.msra.mxu0 0.0
    %1310 = vmatprep.subr.mxu0 0.0
    %1311 = vmatpush1.msra.mxu0 0.0
    %1312 = vmatprep.subr.mxu0 0.0
    %1313 = vmatpush1.msra.mxu0 0.0
    %1314 = vmatprep.subr.mxu0 0.0
    %1315 = vmatpush1.msra.mxu0 0.0
    %1316 = vmatprep.subr.mxu0 0.0
    %1317 = vmatpush1.msra.mxu0 0.0
    %1318 = vmatprep.subr.mxu0 0.0
    %1319 = vmatpush1.msra.mxu0 0.0
    %1320 = vmatprep.subr.mxu0 0.0
    %1321 = vmatpush1.msra.mxu0 0.0
    %1322 = vmatprep.subr.mxu0 0.0
    %1323 = vmatpush1.msra.mxu0 0.0
    %1324 = vmatprep.subr.mxu0 0.0
    %1325 = vmatpush1.msra.mxu0 0.0
    %1326 = vmatprep.subr.mxu0 0.0
    %1327 = vmatpush1.msra.mxu0 0.0
    %1328 = vmatprep.subr.mxu0 0.0
    %1329 = vmatpush1.msra.mxu0 0.0
    %1330 = vmatprep.subr.mxu0 0.0
    %1331 = vmatpush1.msra.mxu0 0.0
    %1332 = vmatprep.subr.mxu0 0.0
    %1333 = vmatpush1.msra.mxu0 0.0
    %1334 = vmatprep.subr.mxu0 0.0
    %1335 = vmatpush1.msra.mxu0 0.0
    %1336 = vmatprep.subr.mxu0 0.0
    %1337 = vmatpush1.msra.mxu0 0.0
    %1338 = vmatprep.mubr.f32.mxu0 0.0
    %v1339 = vand.u32 %v703, 4294901760
    %1340 = vmatmul.mubr.f32.gmra.mrb[0].mxu0 %v1339
    %v1341 = vpop.f32.mrb[0].mxu0
    %v1342 = vadd.f32 %v1255, %v1341
    %v1343 = vpop.f32.mrb[0].mxu0
    %1344 = vdwg.mxu0
    %v1345 = vmul.f32 %v1342, 0.03125
    %v1346 = vadd.f32 %v1345, 1e-05
    %v1347 = vrsqrt.pop %v1346
    %v1348 = vld [vmem:[%s1] sm:$0x1]
    %v1349 = vmul.f32 %v702, %v1347
    %v1351 = vlaneseq
    %v1352 = vshrl.u32 %v1351, 7
    %v1353 = vsub.s32 0, %v1352
    %v1354 = vrot.slane %v1348, %v1353
    %v1356 = vmul.f32 %v1354, %v1349
    %1357 = vst [vmem:[#allocation7] sm:$0xff] %v1356
    // Predicated region
    $region22: #{tpu_custom_call.1} parent=1 // pred_check
      _
    $region23: #{tpu_custom_call.1} parent=1 // pred_check_branch
      %1359 = sbr.rel (0) target = $region25
    $region24: #{tpu_custom_call.1} parent=1 // pred_region
      %s1361 = ssub.s32 128, 64
      %1362 = vsyncadd [#allocation4], %s1361
      %s1363 = sshll.u32 [#allocation7], 4
      %s1364 = int_to_ptr.vmem [resolvable:$true] %s1363
      %1369 = dma.vmem_to_hbm [thread:$0]  %s1364, 64, %s3, [#allocation4], 64, 64, 4
    $region25: #{tpu_custom_call.1} parent=1 // pred_fallthru
      _
    // Predicated region
    $region26: #{tpu_custom_call.1} parent=1 // pred_check
      _
    $region27: #{tpu_custom_call.1} parent=1 // pred_check_branch
      %1371 = sbr.rel (0) target = $region29
    $region28: #{tpu_custom_call.1} parent=1 // pred_region
      %1372 = dma.done [#allocation4], 128
    $region29: #{tpu_custom_call.1} parent=1 // pred_fallthru
      _
    %1373 = vsyncpa [#allocation3], 1
    %1374 = vsyncpa [#allocation6], 1
    %1375 = vsyncpa [#allocation4], 1

</llo_original>
